<compile_context>
chip_gen: v7x
topology: tpu7x:2x2x1
jax: 0.10.0
libtpu: 0.0.40
codegen_flags: <defaults>
</compile_context>

<pallas_src>
import functools

import jax
import jax.numpy as jnp
from jax.experimental import pallas as pl
from jax.experimental.pallas import tpu as pltpu


def _round_up(x, m):
    return (x + m - 1) // m * m


def _mixed_dqn_kernel(cs_ref, x_ref, wce_ref, w1_ref, w2_ref, wf1_ref, wf2_ref,
                      b_ref, out_ref, *, E, C2, H):
    """One batch tile: five small matmuls, all weights VMEM-resident, no scratch."""
    f32 = jnp.float32
    relu = lambda v: jnp.maximum(v, 0.0)

    def mm(a, w):   # MXU operands in the weights' dtype, f32 accumulation
        return jnp.dot(a.astype(w.dtype), w, preferred_element_type=f32)

    bias = b_ref[...]                                              # (8, L*C1) f32

    # ---- controllable embedding: Linear -> relu (use_bn=False) ----
    cs_e = relu(mm(cs_ref[...], wce_ref[...]) + bias[1:2, 0:E])    # (TB, E)

    # ---- uncontrollable embedding ----
    # conv1d(7->16, k=3, pad=1) folded host-side into one banded matmul over the
    # natural channel-major (Cin*L) rows; conv1d(16->32) + mean-over-L folded
    # into one (L*C1, C2) matrix (conv2 is linear and feeds the mean directly).
    y1 = relu(mm(x_ref[...], w1_ref[...]) + bias[0:1, :])          # (TB, L*C1)
    ucs_e = relu(mm(y1, w2_ref[...]) + bias[2:3, 0:C2])            # (TB, C2)

    # ---- 'cat' merge + dqn head: fc1 split over the two halves, relu, fc2 ----
    h = relu(mm(cs_e, wf1_ref[0:E, :]) + mm(ucs_e, wf1_ref[E:E + C2, :])
             + bias[3:4, 0:H])                                     # (TB, H)
    q = mm(h, wf2_ref[...]) + bias[4:5, 0:128]                     # (TB, 128) lane-dense
    out_ref[...] = q.astype(out_ref.dtype)


@functools.partial(jax.jit, static_argnames=("block_b", "compute_dtype"))
def mixed_dqn_unc_cnn_forward(params, controllable_state, uncontrollable_state,
                              *, block_b=256, compute_dtype=jnp.bfloat16):
    """block_b: batch rows per grid step (multiple of 8). 128 is a good choice on
    v5e, 256 on v6e/v7x; it is clamped so the grid has >=2 steps whenever the
    batch allows (so the "parallel" axis can use both v7x TensorCores)."""
    f32 = jnp.float32
    cd = compute_dtype
    B, Ncs = controllable_state.shape
    _, Cin, L = uncontrollable_state.shape
    E = params['w_ce'].shape[1]
    K, _, C1 = params['w1'].shape
    C2 = params['w2'].shape[2]
    H = params['w_fc1'].shape[1]
    A = params['w_fc2'].shape[1]
    assert K == 3 and A <= 128 and L * C1 >= 128
    assert params['w_fc1'].shape[0] == E + C2          # 'cat' embedding merge
    assert block_b >= 8

    # ---- batch tiling ----
    B_r8 = _round_up(B, 8)
    if B_r8 >= 16:
        TB = min(_round_up(block_b, 8), _round_up(pl.cdiv(B_r8, 2), 8))
    else:
        TB = 8
    n_blk = pl.cdiv(B_r8, TB)
    B_pad = n_blk * TB

    # ---- fold the conv structure into dense matmul operands (tiny, host/XLA) --
    w1 = params['w1'].astype(f32)       # (3, Cin, C1): taps <-> input offsets -1,0,+1
    w2 = params['w2'].astype(f32)       # (3, C1, C2)   (== torch W.transpose(2,1,0))
    pos = jnp.arange(L)
    # band[k, p, l] = 1 iff p == l + (k-1)   (zero-padded 'same' conv, k=3)
    band = (pos[None, :, None] ==
            pos[None, None, :] + (jnp.arange(3) - 1)[:, None, None]).astype(f32)
    w1b = jnp.einsum('kio,kpl->iplo', w1, band).reshape(Cin * L, L * C1)
    # cnt[k, p] = #output positions that read input position p through tap k
    cnt = jnp.stack([(pos <= L - 2), jnp.ones((L,), bool), (pos >= 1)]).astype(f32)
    w2m = jnp.einsum('kio,kp->pio', w2, cnt).reshape(L * C1, C2) * (1.0 / L)

    ncs_pad = _round_up(Ncs, 8)
    wce = jnp.zeros((ncs_pad, E), f32).at[:Ncs].set(params['w_ce'].astype(f32))
    wf1 = params['w_fc1'].astype(f32)                                # (E + C2, H)
    wf2 = jnp.zeros((H, 128), f32).at[:, :A].set(params['w_fc2'].astype(f32))

    bias = jnp.zeros((8, L * C1), f32)       # bias/elementwise path stays f32
    bias = bias.at[0, :].set(jnp.tile(params['b1'].astype(f32), L))  # per (l, c1)
    bias = bias.at[1, :E].set(params['b_ce'].astype(f32))
    bias = bias.at[2, :C2].set(params['b2'].astype(f32))
    bias = bias.at[3, :H].set(params['b_fc1'].astype(f32))
    bias = bias.at[4, :A].set(params['b_fc2'].astype(f32))

    # ---- activations: raw channel-major layout (free reshape, no transpose);
    #      batch zero-pad only when B does not divide the tile.
    cs_p = jnp.zeros((B_pad, ncs_pad), cd).at[:B, :Ncs].set(
        controllable_state.astype(cd))
    x_rows = uncontrollable_state.astype(cd).reshape(B, Cin * L)
    if B_pad != B:
        x_rows = jnp.pad(x_rows, ((0, B_pad - B), (0, 0)))

    kernel = functools.partial(_mixed_dqn_kernel, E=E, C2=C2, H=H)
    grid_spec = pltpu.PrefetchScalarGridSpec(
        num_scalar_prefetch=0,
        grid=(n_blk,),
        in_specs=[
            pl.BlockSpec((TB, ncs_pad), lambda i: (i, 0)),        # controllable state
            pl.BlockSpec((TB, Cin * L), lambda i: (i, 0)),        # uncontrollable rows
            pl.BlockSpec((ncs_pad, E), lambda i: (0, 0)),         # weights: grid-invariant,
            pl.BlockSpec((Cin * L, L * C1), lambda i: (0, 0)),    #   VMEM-resident
            pl.BlockSpec((L * C1, C2), lambda i: (0, 0)),
            pl.BlockSpec((E + C2, H), lambda i: (0, 0)),
            pl.BlockSpec((H, 128), lambda i: (0, 0)),
            pl.BlockSpec((8, L * C1), lambda i: (0, 0)),          # bias slab (f32)
        ],
        out_specs=pl.BlockSpec((TB, 128), lambda i: (i, 0)),      # lane-dense output
    )
    out = pl.pallas_call(
        kernel,
        out_shape=jax.ShapeDtypeStruct((B_pad, 128), f32),
        grid_spec=grid_spec,
        # Per-step VMEM footprint is a few hundred KB even at TB=512, well under
        # the 16/32 MiB scoped defaults -> no vmem_limit_bytes override needed.
        compiler_params=pltpu.CompilerParams(
            dimension_semantics=("parallel",)),
    )(cs_p, x_rows, wce.astype(cd), w1b.astype(cd), w2m.astype(cd),
      wf1.astype(cd), wf2.astype(cd), bias)
    return out[:B, :A]


def init_params(key, Ncs, E, H, A, cin=7, L=16):
    """Deterministic synthetic parameters (torch-default-style uniform init)."""
    ks = jax.random.split(key, 10)

    def lin(k, fan_in, shape):
        b = 1.0 / jnp.sqrt(jnp.float32(fan_in))
        return jax.random.uniform(k, shape, jnp.float32, -b, b)

    return dict(
        w_ce=lin(ks[0], Ncs, (Ncs, E)), b_ce=lin(ks[1], Ncs, (E,)),
        # conv weights stored per-tap as (K=3, C_in, C_out) == torch W.transpose(2,1,0)
        w1=lin(ks[2], cin * 3, (3, cin, 16)), b1=lin(ks[3], cin * 3, (16,)),
        w2=lin(ks[4], 16 * 3, (3, 16, 32)), b2=lin(ks[5], 16 * 3, (32,)),
        w_fc1=lin(ks[6], 2 * E, (2 * E, H)), b_fc1=lin(ks[7], 2 * E, (H,)),
        w_fc2=lin(ks[8], H, (H, A)), b_fc2=lin(ks[9], H, (A,)),
    )


def reference_forward(params, cs, ucs):
    """Pure-JAX reference mirroring the PyTorch forward (use_bn=False, relu, 'cat')."""
    relu = jax.nn.relu
    cse = relu(cs @ params['w_ce'] + params['b_ce'])

    def conv1d(x, w_taps, b):                     # x: (B, C_in, L), 'same' conv, k=3
        _, _, Ln = x.shape
        xp = jnp.pad(x, ((0, 0), (0, 0), (1, 1)))
        out = b[None, :, None]
        for k in range(3):
            out = out + jnp.einsum('bil,io->bol', xp[:, :, k:k + Ln], w_taps[k])
        return out

    y1 = relu(conv1d(ucs, params['w1'], params['b1']))
    y2 = conv1d(y1, params['w2'], params['b2'])
    ucse = relu(y2.mean(-1))
    merged = jnp.concatenate([cse, ucse], axis=-1)
    h = relu(merged @ params['w_fc1'] + params['b_fc1'])
    return h @ params['w_fc2'] + params['b_fc2']


if __name__ == "__main__":
    B, Ncs, E, H, A, CIN, L = 2, 10, 32, 64, 5, 7, 16
    key = jax.random.PRNGKey(0)
    kp, kc, ku = jax.random.split(key, 3)
    params = init_params(kp, Ncs, E, H, A, CIN, L)
    controllable_state = jax.random.normal(kc, (B, Ncs), jnp.float32)
    uncontrollable_state = jax.random.normal(ku, (B, CIN, L), jnp.float32)
    ref = reference_forward(params, controllable_state, uncontrollable_state)

    # default path: bf16 MXU operands, f32 accumulation / f32 elementwise
    out = mixed_dqn_unc_cnn_forward(params, controllable_state, uncontrollable_state)
    jax.block_until_ready(out)
    assert out.shape == (B, A)
    assert jnp.allclose(out, ref, atol=5e-2, rtol=5e-2), (out, ref)

    # f32 operand path (tolerance covers default MXU matmul precision on real HW)
    out_f32 = mixed_dqn_unc_cnn_forward(params, controllable_state,
                                        uncontrollable_state,
                                        compute_dtype=jnp.float32)
    jax.block_until_ready(out_f32)
    assert jnp.allclose(out_f32, ref, atol=2e-2, rtol=2e-2), (out_f32, ref)

    # larger batch exercising a multi-step grid and batch padding (B % TB != 0)
    B2 = 37
    kc2, ku2 = jax.random.split(jax.random.PRNGKey(1), 2)
    cs2 = jax.random.normal(kc2, (B2, Ncs), jnp.float32)
    ucs2 = jax.random.normal(ku2, (B2, CIN, L), jnp.float32)
    ref2 = reference_forward(params, cs2, ucs2)
    out2 = mixed_dqn_unc_cnn_forward(params, cs2, ucs2, block_b=16)
    jax.block_until_ready(out2)
    assert out2.shape == (B2, A)
    assert jnp.allclose(out2, ref2, atol=5e-2, rtol=5e-2), (out2, ref2)

    # TODO(synk): BatchNorm branches (use_bn=True) and uncontrollable_pred_head
    # are not exercised by this config's forward and are not implemented.
    print("KERNEL_OK")
</pallas_src>

<mosaic_0001>
module attributes {stable_mosaic.version = 11 : i64} {
  func.func @_mixed_dqn_kernel(%arg0: i32, %arg1: memref<8x16xbf16, #tpu.memory_space<vmem>>, %arg2: memref<8x112xbf16, #tpu.memory_space<vmem>>, %arg3: memref<16x32xbf16, #tpu.memory_space<vmem>>, %arg4: memref<112x256xbf16, #tpu.memory_space<vmem>>, %arg5: memref<256x32xbf16, #tpu.memory_space<vmem>>, %arg6: memref<64x64xbf16, #tpu.memory_space<vmem>>, %arg7: memref<64x128xbf16, #tpu.memory_space<vmem>>, %arg8: memref<8x256xf32, #tpu.memory_space<vmem>>, %arg9: memref<8x128xf32, #tpu.memory_space<vmem>>) attributes {dimension_semantics = [#tpu.dimension_semantics<parallel>], iteration_bounds = array<i64: 1>, scalar_prefetch = 0 : i64, scratch_operands = 0 : i64, tpu.core_type = #tpu.core_type<tc>, window_params = [{transform_indices = @transform_0, window_bounds = array<i64: 8, 16>}, {transform_indices = @transform_1, window_bounds = array<i64: 8, 112>}, {pipeline_mode = #tpu.pipeline_mode<synchronous>, transform_indices = @transform_2, window_bounds = array<i64: 16, 32>}, {pipeline_mode = #tpu.pipeline_mode<synchronous>, transform_indices = @transform_3, window_bounds = array<i64: 112, 256>}, {pipeline_mode = #tpu.pipeline_mode<synchronous>, transform_indices = @transform_4, window_bounds = array<i64: 256, 32>}, {pipeline_mode = #tpu.pipeline_mode<synchronous>, transform_indices = @transform_5, window_bounds = array<i64: 64, 64>}, {pipeline_mode = #tpu.pipeline_mode<synchronous>, transform_indices = @transform_6, window_bounds = array<i64: 64, 128>}, {pipeline_mode = #tpu.pipeline_mode<synchronous>, transform_indices = @transform_7, window_bounds = array<i64: 8, 256>}, {transform_indices = @transform_8, window_bounds = array<i64: 8, 128>}]} {
    %c0 = arith.constant 0 : index
    %c0_0 = arith.constant 0 : index
    %0 = vector.load %arg8[%c0, %c0_0] : memref<8x256xf32, #tpu.memory_space<vmem>>, vector<8x256xf32>
    %c0_1 = arith.constant 0 : index
    %c0_2 = arith.constant 0 : index
    %1 = vector.load %arg1[%c0_1, %c0_2] : memref<8x16xbf16, #tpu.memory_space<vmem>>, vector<8x16xbf16>
    %c0_3 = arith.constant 0 : index
    %c0_4 = arith.constant 0 : index
    %2 = vector.load %arg3[%c0_3, %c0_4] : memref<16x32xbf16, #tpu.memory_space<vmem>>, vector<16x32xbf16>
    %cst = arith.constant dense<0.000000e+00> : vector<8x32xf32>
    %3 = tpu.matmul %1, %2, %cst {dimension_numbers = #tpu.dot_dimension_numbers<[1], [0], [0], [1], [0, 0, 1, 1], [], []>} : vector<8x16xbf16>, vector<16x32xbf16>, vector<8x32xf32> -> vector<8x32xf32>
    %4 = vector.extract_strided_slice %0 {offsets = [1, 0], sizes = [1, 32], strides = [1, 1]} : vector<8x256xf32> to vector<1x32xf32>
    %5 = vector.broadcast %4 : vector<1x32xf32> to vector<8x32xf32>
    %6 = arith.addf %3, %5 : vector<8x32xf32>
    %cst_5 = arith.constant 0.000000e+00 : f32
    %7 = vector.broadcast %cst_5 : f32 to vector<8x32xf32>
    %8 = arith.maximumf %6, %7 : vector<8x32xf32>
    %c0_6 = arith.constant 0 : index
    %c0_7 = arith.constant 0 : index
    %9 = vector.load %arg2[%c0_6, %c0_7] : memref<8x112xbf16, #tpu.memory_space<vmem>>, vector<8x112xbf16>
    %c0_8 = arith.constant 0 : index
    %c0_9 = arith.constant 0 : index
    %10 = vector.load %arg4[%c0_8, %c0_9] : memref<112x256xbf16, #tpu.memory_space<vmem>>, vector<112x256xbf16>
    %cst_10 = arith.constant dense<0.000000e+00> : vector<8x256xf32>
    %11 = tpu.matmul %9, %10, %cst_10 {dimension_numbers = #tpu.dot_dimension_numbers<[1], [0], [0], [1], [0, 0, 1, 1], [], []>} : vector<8x112xbf16>, vector<112x256xbf16>, vector<8x256xf32> -> vector<8x256xf32>
    %12 = vector.extract_strided_slice %0 {offsets = [0, 0], sizes = [1, 256], strides = [1, 1]} : vector<8x256xf32> to vector<1x256xf32>
    %13 = vector.broadcast %12 : vector<1x256xf32> to vector<8x256xf32>
    %14 = arith.addf %11, %13 : vector<8x256xf32>
    %cst_11 = arith.constant 0.000000e+00 : f32
    %15 = vector.broadcast %cst_11 : f32 to vector<8x256xf32>
    %16 = arith.maximumf %14, %15 : vector<8x256xf32>
    %c0_12 = arith.constant 0 : index
    %c0_13 = arith.constant 0 : index
    %17 = vector.load %arg5[%c0_12, %c0_13] : memref<256x32xbf16, #tpu.memory_space<vmem>>, vector<256x32xbf16>
    %18 = arith.truncf %16 : vector<8x256xf32> to vector<8x256xbf16>
    %cst_14 = arith.constant dense<0.000000e+00> : vector<8x32xf32>
    %19 = tpu.matmul %18, %17, %cst_14 {dimension_numbers = #tpu.dot_dimension_numbers<[1], [0], [0], [1], [0, 0, 1, 1], [], []>} : vector<8x256xbf16>, vector<256x32xbf16>, vector<8x32xf32> -> vector<8x32xf32>
    %20 = vector.extract_strided_slice %0 {offsets = [2, 0], sizes = [1, 32], strides = [1, 1]} : vector<8x256xf32> to vector<1x32xf32>
    %21 = vector.broadcast %20 : vector<1x32xf32> to vector<8x32xf32>
    %22 = arith.addf %19, %21 : vector<8x32xf32>
    %cst_15 = arith.constant 0.000000e+00 : f32
    %23 = vector.broadcast %cst_15 : f32 to vector<8x32xf32>
    %24 = arith.maximumf %22, %23 : vector<8x32xf32>
    %c0_16 = arith.constant 0 : index
    %c0_17 = arith.constant 0 : index
    %25 = vector.load %arg6[%c0_16, %c0_17] : memref<64x64xbf16, #tpu.memory_space<vmem>>, vector<32x64xbf16>
    %26 = arith.truncf %8 : vector<8x32xf32> to vector<8x32xbf16>
    %cst_18 = arith.constant dense<0.000000e+00> : vector<8x64xf32>
    %27 = tpu.matmul %26, %25, %cst_18 {dimension_numbers = #tpu.dot_dimension_numbers<[1], [0], [0], [1], [0, 0, 1, 1], [], []>} : vector<8x32xbf16>, vector<32x64xbf16>, vector<8x64xf32> -> vector<8x64xf32>
    %c32 = arith.constant 32 : index
    %c0_19 = arith.constant 0 : index
    %28 = vector.load %arg6[%c32, %c0_19] : memref<64x64xbf16, #tpu.memory_space<vmem>>, vector<32x64xbf16>
    %29 = arith.truncf %24 : vector<8x32xf32> to vector<8x32xbf16>
    %cst_20 = arith.constant dense<0.000000e+00> : vector<8x64xf32>
    %30 = tpu.matmul %29, %28, %cst_20 {dimension_numbers = #tpu.dot_dimension_numbers<[1], [0], [0], [1], [0, 0, 1, 1], [], []>} : vector<8x32xbf16>, vector<32x64xbf16>, vector<8x64xf32> -> vector<8x64xf32>
    %31 = arith.addf %27, %30 : vector<8x64xf32>
    %32 = vector.extract_strided_slice %0 {offsets = [3, 0], sizes = [1, 64], strides = [1, 1]} : vector<8x256xf32> to vector<1x64xf32>
    %33 = vector.broadcast %32 : vector<1x64xf32> to vector<8x64xf32>
    %34 = arith.addf %31, %33 : vector<8x64xf32>
    %cst_21 = arith.constant 0.000000e+00 : f32
    %35 = vector.broadcast %cst_21 : f32 to vector<8x64xf32>
    %36 = arith.maximumf %34, %35 : vector<8x64xf32>
    %c0_22 = arith.constant 0 : index
    %c0_23 = arith.constant 0 : index
    %37 = vector.load %arg7[%c0_22, %c0_23] : memref<64x128xbf16, #tpu.memory_space<vmem>>, vector<64x128xbf16>
    %38 = arith.truncf %36 : vector<8x64xf32> to vector<8x64xbf16>
    %cst_24 = arith.constant dense<0.000000e+00> : vector<8x128xf32>
    %39 = tpu.matmul %38, %37, %cst_24 {dimension_numbers = #tpu.dot_dimension_numbers<[1], [0], [0], [1], [0, 0, 1, 1], [], []>} : vector<8x64xbf16>, vector<64x128xbf16>, vector<8x128xf32> -> vector<8x128xf32>
    %40 = vector.extract_strided_slice %0 {offsets = [4, 0], sizes = [1, 128], strides = [1, 1]} : vector<8x256xf32> to vector<1x128xf32>
    %41 = vector.broadcast %40 : vector<1x128xf32> to vector<8x128xf32>
    %42 = arith.addf %39, %41 : vector<8x128xf32>
    %c0_25 = arith.constant 0 : index
    %c0_26 = arith.constant 0 : index
    %43 = vector.load %arg9[%c0_25, %c0_26] : memref<8x128xf32, #tpu.memory_space<vmem>>, vector<8x128xf32>
    tpu.vector_store %arg9[%c0_25, %c0_26], %42 {strides = array<i32>} : memref<8x128xf32, #tpu.memory_space<vmem>>, vector<8x128xf32>,
    return
  }
  func.func @transform_0(%arg0: i32) -> (i32, i32) {
    %c0_i32 = arith.constant 0 : i32
    %c0_i32_0 = arith.constant 0 : i32
    return %arg0, %c0_i32 : i32, i32
  }
  func.func @transform_1(%arg0: i32) -> (i32, i32) {
    %c0_i32 = arith.constant 0 : i32
    %c0_i32_0 = arith.constant 0 : i32
    return %arg0, %c0_i32 : i32, i32
  }
  func.func @transform_2(%arg0: i32) -> (i32, i32) {
    %c0_i32 = arith.constant 0 : i32
    %c0_i32_0 = arith.constant 0 : i32
    %c0_i32_1 = arith.constant 0 : i32
    return %c0_i32, %c0_i32_0 : i32, i32
  }
  func.func @transform_3(%arg0: i32) -> (i32, i32) {
    %c0_i32 = arith.constant 0 : i32
    %c0_i32_0 = arith.constant 0 : i32
    %c0_i32_1 = arith.constant 0 : i32
    return %c0_i32, %c0_i32_0 : i32, i32
  }
  func.func @transform_4(%arg0: i32) -> (i32, i32) {
    %c0_i32 = arith.constant 0 : i32
    %c0_i32_0 = arith.constant 0 : i32
    %c0_i32_1 = arith.constant 0 : i32
    return %c0_i32, %c0_i32_0 : i32, i32
  }
  func.func @transform_5(%arg0: i32) -> (i32, i32) {
    %c0_i32 = arith.constant 0 : i32
    %c0_i32_0 = arith.constant 0 : i32
    %c0_i32_1 = arith.constant 0 : i32
    return %c0_i32, %c0_i32_0 : i32, i32
  }
  func.func @transform_6(%arg0: i32) -> (i32, i32) {
    %c0_i32 = arith.constant 0 : i32
    %c0_i32_0 = arith.constant 0 : i32
    %c0_i32_1 = arith.constant 0 : i32
    return %c0_i32, %c0_i32_0 : i32, i32
  }
  func.func @transform_7(%arg0: i32) -> (i32, i32) {
    %c0_i32 = arith.constant 0 : i32
    %c0_i32_0 = arith.constant 0 : i32
    %c0_i32_1 = arith.constant 0 : i32
    return %c0_i32, %c0_i32_0 : i32, i32
  }
  func.func @transform_8(%arg0: i32) -> (i32, i32) {
    %c0_i32 = arith.constant 0 : i32
    %c0_i32_0 = arith.constant 0 : i32
    return %arg0, %c0_i32 : i32, i32
  }
}

</mosaic_0001>

<llo_original>
// kernel: tile.8
$region0: #{tile.8}
  #allocation0 [shape = 's32[1]{0}', space=sflag, size = 0x4, scoped, tag = 'scoped memory for tile.8']
  %s0 = inlined_call_operand.vmem [shape: f32[16], index: 0, kind: input, shape index: {}]
  %s1 = inlined_call_operand.vmem [shape: f32[16,16], index: 1, kind: output, shape index: {}]
  // Predicated region
  $region2: #{tile.8} parent=0 // pred_check
    _
  $region3: #{tile.8} parent=0 // pred_check_branch
    %3 = sbr.rel (0) target = $region5
  $region4: #{tile.8} parent=0 // pred_region
    _
  $region5: #{tile.8} parent=0 // pred_fallthru
    _
  %v4 = vld [vmem:[%s0] ss:$0 sm:$0xff]
  %5 = vst [vmem:[%s1] sm:$0xff] %v4
  %s6 = scalar_lea.vmem %s1, 8
  %7 = vst [vmem:[%s6] sm:$0xff] %v4

// kernel: mixed_dqn_unc_cnn_forward.1
$region0: #{mixed_dqn_unc_cnn_forward.1}
  #allocation0 [shape = 'u32[]', space=smem, size = 0x4, offset = 0x4, fixed_abs, tag = 'smem constant byte address 0x4 - core index']
  #allocation1 [shape = 'u32[144,128]{1,0:T(1,128)}', space=vmem, size = 0x12000, scoped, tag = 'internal scratch']
  %s0 = inlined_call_operand.vmem [shape: bf16[8,16], index: 0, kind: input, shape index: {}]
  %s1 = inlined_call_operand.vmem [shape: bf16[8,112], index: 1, kind: input, shape index: {}]
  %s2 = inlined_call_operand.vmem [shape: bf16[16,32], index: 2, kind: input, shape index: {}]
  %s3 = inlined_call_operand.vmem [shape: bf16[112,256], index: 3, kind: input, shape index: {}]
  %s4 = inlined_call_operand.vmem [shape: bf16[256,32], index: 4, kind: input, shape index: {}]
  %s5 = inlined_call_operand.vmem [shape: bf16[64,64], index: 5, kind: input, shape index: {}]
  %s6 = inlined_call_operand.vmem [shape: bf16[64,128], index: 6, kind: input, shape index: {}]
  %s7 = inlined_call_operand.vmem [shape: f32[8,256], index: 7, kind: input, shape index: {}]
  %s8 = inlined_call_operand.vmem [shape: f32[8,128], index: 8, kind: output, shape index: {}]
  %s9 = sld [smem:[#allocation0]]
  $region42: #{mixed_dqn_unc_cnn_forward.1} parent=0
    _
  %s11 = ssub.s32 1, %s9
  %s12 = scalar_select 0, %s11, %s9
  // Predicated region
  $region2: #{mixed_dqn_unc_cnn_forward.1} parent=0 // pred_check
    _
  $region3: #{mixed_dqn_unc_cnn_forward.1} parent=0 // pred_check_branch
    %14 = sbr.rel (0) target = $region5
  $region4: #{mixed_dqn_unc_cnn_forward.1} parent=0 // pred_region
    _
  $region5: #{mixed_dqn_unc_cnn_forward.1} parent=0 // pred_fallthru
    _
  // Predicated region
  $region6: #{mixed_dqn_unc_cnn_forward.1} parent=0 // pred_check
    _
  $region7: #{mixed_dqn_unc_cnn_forward.1} parent=0 // pred_check_branch
    %16 = sbr.rel (0) target = $region9
  $region8: #{mixed_dqn_unc_cnn_forward.1} parent=0 // pred_region
    _
  $region9: #{mixed_dqn_unc_cnn_forward.1} parent=0 // pred_fallthru
    _
  // Predicated region
  $region10: #{mixed_dqn_unc_cnn_forward.1} parent=0 // pred_check
    _
  $region11: #{mixed_dqn_unc_cnn_forward.1} parent=0 // pred_check_branch
    %18 = sbr.rel (0) target = $region13
  $region12: #{mixed_dqn_unc_cnn_forward.1} parent=0 // pred_region
    _
  $region13: #{mixed_dqn_unc_cnn_forward.1} parent=0 // pred_fallthru
    _
  // Predicated region
  $region14: #{mixed_dqn_unc_cnn_forward.1} parent=0 // pred_check
    _
  $region15: #{mixed_dqn_unc_cnn_forward.1} parent=0 // pred_check_branch
    %20 = sbr.rel (0) target = $region17
  $region16: #{mixed_dqn_unc_cnn_forward.1} parent=0 // pred_region
    _
  $region17: #{mixed_dqn_unc_cnn_forward.1} parent=0 // pred_fallthru
    _
  // Predicated region
  $region18: #{mixed_dqn_unc_cnn_forward.1} parent=0 // pred_check
    _
  $region19: #{mixed_dqn_unc_cnn_forward.1} parent=0 // pred_check_branch
    %22 = sbr.rel (0) target = $region21
  $region20: #{mixed_dqn_unc_cnn_forward.1} parent=0 // pred_region
    _
  $region21: #{mixed_dqn_unc_cnn_forward.1} parent=0 // pred_fallthru
    _
  // Predicated region
  $region22: #{mixed_dqn_unc_cnn_forward.1} parent=0 // pred_check
    _
  $region23: #{mixed_dqn_unc_cnn_forward.1} parent=0 // pred_check_branch
    %24 = sbr.rel (0) target = $region25
  $region24: #{mixed_dqn_unc_cnn_forward.1} parent=0 // pred_region
    _
  $region25: #{mixed_dqn_unc_cnn_forward.1} parent=0 // pred_fallthru
    _
  // Predicated region
  $region26: #{mixed_dqn_unc_cnn_forward.1} parent=0 // pred_check
    _
  $region27: #{mixed_dqn_unc_cnn_forward.1} parent=0 // pred_check_branch
    %26 = sbr.rel (0) target = $region29
  $region28: #{mixed_dqn_unc_cnn_forward.1} parent=0 // pred_region
    _
  $region29: #{mixed_dqn_unc_cnn_forward.1} parent=0 // pred_fallthru
    _
  // Predicated region
  $region30: #{mixed_dqn_unc_cnn_forward.1} parent=0 // pred_check
    _
  $region31: #{mixed_dqn_unc_cnn_forward.1} parent=0 // pred_check_branch
    %28 = sbr.rel (0) target = $region33
  $region32: #{mixed_dqn_unc_cnn_forward.1} parent=0 // pred_region
    _
  $region33: #{mixed_dqn_unc_cnn_forward.1} parent=0 // pred_fallthru
    _
  %v30 = vld [vmem:[%s7] sm:$0xff]
  %v31 = vld [vmem:[%s7 + $0x8] sm:$0xff]
  %v32 = vld [vmem:[%s0] sm:$0xf]
  %v33 = vld [vmem:[%s2] sm:$0xf]
  %v34 = vld [vmem:[%s2 + $0x4] sm:$0xf]
  %v35 = vlaneseq
  %v36 = vshrl.u32 %v35, 7
  %v37 = vsub.s32 1, %v36
  %v38 = vrot.slane %v30, %v37
  %v41 = vunpack.c.l.b16 %v33
  %v42 = vunpack.c.l.b16 %v34
  %v43 = vpack.c.b16 %v42, %v41
  %vm45 = vcmask 130048
  %v47 = vsel %vm45, %v32, 0
  %49 = vmatprep.subr.bf16.mxu0 0
  %50 = vmatpush1.bf16.msra.mxu0 %v43
  %51 = vmatprep.subr.bf16.mxu0 0
  %52 = vmatpush1.bf16.msra.mxu0 0
  %53 = vmatprep.subr.bf16.mxu0 0
  %54 = vmatpush1.bf16.msra.mxu0 0
  %55 = vmatprep.subr.bf16.mxu0 0
  %56 = vmatpush1.bf16.msra.mxu0 0
  %57 = vmatprep.subr.bf16.mxu0 0
  %58 = vmatpush1.bf16.msra.mxu0 0
  %59 = vmatprep.subr.bf16.mxu0 0
  %60 = vmatpush1.bf16.msra.mxu0 0
  %61 = vmatprep.subr.bf16.mxu0 0
  %62 = vmatpush1.bf16.msra.mxu0 0
  %63 = vmatprep.subr.bf16.mxu0 0
  %64 = vmatpush1.bf16.msra.mxu0 0
  %65 = vmatprep.subr.bf16.mxu0 0
  %66 = vmatpush1.bf16.msra.mxu0 0
  %67 = vmatprep.subr.bf16.mxu0 0
  %68 = vmatpush1.bf16.msra.mxu0 0
  %69 = vmatprep.subr.bf16.mxu0 0
  %70 = vmatpush1.bf16.msra.mxu0 0
  %71 = vmatprep.subr.bf16.mxu0 0
  %72 = vmatpush1.bf16.msra.mxu0 0
  %73 = vmatprep.subr.bf16.mxu0 0
  %74 = vmatpush1.bf16.msra.mxu0 0
  %75 = vmatprep.subr.bf16.mxu0 0
  %76 = vmatpush1.bf16.msra.mxu0 0
  %77 = vmatprep.subr.bf16.mxu0 0
  %78 = vmatpush1.bf16.msra.mxu0 0
  %79 = vmatprep.subr.bf16.mxu0 0
  %80 = vmatpush1.bf16.msra.mxu0 0
  %81 = vmatprep.mubr.bf16.mxu0 0
  %82 = vmatmul.mubr.bf16.gmra.mrb[0].mxu0 %v47
  %v83 = vpop.f32.mrb[0].mxu0
  %v84 = vadd.f32 %v38, %v83
  %v85 = vpop.f32.mrb[0].mxu0
  %v86 = vpop.f32.mrb[0].mxu0
  %v87 = vpop.f32.mrb[0].mxu0
  %88 = vdwg.mxu0
  %v89 = vmax.f32 %v84, 0.0
  %v90 = vld [vmem:[%s1] sm:$0xf]
  %v91 = vld [vmem:[%s3] sm:$0xff]
  %v92 = vld [vmem:[%s3 + $0x8] sm:$0xff]
  %v93 = vld [vmem:[%s3 + $0x10] sm:$0xff]
  %v94 = vld [vmem:[%s3 + $0x18] sm:$0xff]
  %v95 = vld [vmem:[%s3 + $0x20] sm:$0xff]
  %v96 = vld [vmem:[%s3 + $0x28] sm:$0xff]
  %v97 = vld [vmem:[%s3 + $0x30] sm:$0xff]
  %v98 = vld [vmem:[%s3 + $0x38] sm:$0xff]
  %v99 = vld [vmem:[%s3 + $0x40] sm:$0xff]
  %v100 = vld [vmem:[%s3 + $0x48] sm:$0xff]
  %v101 = vld [vmem:[%s3 + $0x50] sm:$0xff]
  %v102 = vld [vmem:[%s3 + $0x58] sm:$0xff]
  %v103 = vld [vmem:[%s3 + $0x60] sm:$0xff]
  %v104 = vld [vmem:[%s3 + $0x68] sm:$0xff]
  %v105 = vlaneseq
  %v106 = vshrl.u32 %v105, 7
  %v107 = vsub.s32 0, %v106
  %v108 = vrot.slane %v30, %v107
  %v109 = vlaneseq
  %v110 = vshrl.u32 %v109, 7
  %v111 = vsub.s32 0, %v110
  %v112 = vrot.slane %v31, %v111
  %v127 = vunpack.c.l.b16 %v91
  %v128 = vunpack.c.h.b16 %v91
  %v129 = vunpack.c.l.b16 %v92
  %v130 = vunpack.c.h.b16 %v92
  %v131 = vunpack.c.l.b16 %v93
  %v132 = vunpack.c.h.b16 %v93
  %v133 = vunpack.c.l.b16 %v94
  %v134 = vunpack.c.h.b16 %v94
  %v135 = vunpack.c.l.b16 %v95
  %v136 = vunpack.c.h.b16 %v95
  %v137 = vunpack.c.l.b16 %v96
  %v138 = vunpack.c.h.b16 %v96
  %v139 = vunpack.c.l.b16 %v97
  %v140 = vunpack.c.h.b16 %v97
  %v141 = vunpack.c.l.b16 %v98
  %v142 = vunpack.c.h.b16 %v98
  %v143 = vunpack.c.l.b16 %v99
  %v144 = vunpack.c.h.b16 %v99
  %v145 = vunpack.c.l.b16 %v100
  %v146 = vunpack.c.h.b16 %v100
  %v147 = vunpack.c.l.b16 %v101
  %v148 = vunpack.c.h.b16 %v101
  %v149 = vunpack.c.l.b16 %v102
  %v150 = vunpack.c.h.b16 %v102
  %v151 = vunpack.c.l.b16 %v103
  %v152 = vunpack.c.h.b16 %v103
  %v153 = vunpack.c.l.b16 %v104
  %v154 = vunpack.c.h.b16 %v104
  %v155 = vpack.c.b16 %v129, %v127
  %v156 = vpack.c.b16 %v130, %v128
  %v157 = vpack.c.b16 %v133, %v131
  %v158 = vpack.c.b16 %v134, %v132
  %v159 = vpack.c.b16 %v137, %v135
  %v160 = vpack.c.b16 %v138, %v136
  %v161 = vpack.c.b16 %v141, %v139
  %v162 = vpack.c.b16 %v142, %v140
  %v163 = vpack.c.b16 %v145, %v143
  %v164 = vpack.c.b16 %v146, %v144
  %v165 = vpack.c.b16 %v149, %v147
  %v166 = vpack.c.b16 %v150, %v148
  %v167 = vpack.c.b16 %v153, %v151
  %v168 = vpack.c.b16 %v154, %v152
  %vm183 = vcmask 916480
  %v185 = vsel %vm183, %v90, 0
  %187 = vmatprep.subr.bf16.mxu0 %v156
  %188 = vmatpush1.bf16.msra.mxu0 %v155
  %189 = vmatprep.subr.bf16.mxu0 %v158
  %190 = vmatpush1.bf16.msra.mxu0 %v157
  %191 = vmatprep.subr.bf16.mxu0 %v160
  %192 = vmatpush1.bf16.msra.mxu0 %v159
  %193 = vmatprep.subr.bf16.mxu0 %v162
  %194 = vmatpush1.bf16.msra.mxu0 %v161
  %195 = vmatprep.subr.bf16.mxu0 %v164
  %196 = vmatpush1.bf16.msra.mxu0 %v163
  %197 = vmatprep.subr.bf16.mxu0 %v166
  %198 = vmatpush1.bf16.msra.mxu0 %v165
  %199 = vmatprep.subr.bf16.mxu0 %v168
  %200 = vmatpush1.bf16.msra.mxu0 %v167
  %201 = vmatprep.subr.bf16.mxu0 0
  %202 = vmatpush1.bf16.msra.mxu0 0
  %203 = vmatprep.subr.bf16.mxu0 0
  %204 = vmatpush1.bf16.msra.mxu0 0
  %205 = vmatprep.subr.bf16.mxu0 0
  %206 = vmatpush1.bf16.msra.mxu0 0
  %207 = vmatprep.subr.bf16.mxu0 0
  %208 = vmatpush1.bf16.msra.mxu0 0
  %209 = vmatprep.subr.bf16.mxu0 0
  %210 = vmatpush1.bf16.msra.mxu0 0
  %211 = vmatprep.subr.bf16.mxu0 0
  %212 = vmatpush1.bf16.msra.mxu0 0
  %213 = vmatprep.subr.bf16.mxu0 0
  %214 = vmatpush1.bf16.msra.mxu0 0
  %215 = vmatprep.subr.bf16.mxu0 0
  %216 = vmatpush1.bf16.msra.mxu0 0
  %217 = vmatprep.subr.bf16.mxu0 0
  %218 = vmatpush1.bf16.msra.mxu0 0
  %219 = vmatprep.mubr.bf16.mxu0 0
  %220 = vmatmul.mubr.bf16.gmra.mrb[0].mxu0 %v185
  %v221 = vpop.f32.mrb[0].mxu0
  %v222 = vadd.f32 %v108, %v221
  %v223 = vpop.f32.mrb[0].mxu0
  %v224 = vadd.f32 %v112, %v223
  %v225 = vpop.f32.mrb[0].mxu0
  %v226 = vpop.f32.mrb[0].mxu0
  %227 = vdwg.mxu0
  %v228 = vmax.f32 %v222, 0.0
  %v229 = vmax.f32 %v224, 0.0
  %v230 = vld [vmem:[%s4] sm:$0xf]
  %v231 = vld [vmem:[%s4 + $0x4] sm:$0xf]
  %v232 = vld [vmem:[%s4 + $0x8] sm:$0xf]
  %v233 = vld [vmem:[%s4 + $0xc] sm:$0xf]
  %v234 = vld [vmem:[%s4 + $0x10] sm:$0xf]
  %v235 = vld [vmem:[%s4 + $0x14] sm:$0xf]
  %v236 = vld [vmem:[%s4 + $0x18] sm:$0xf]
  %v237 = vld [vmem:[%s4 + $0x1c] sm:$0xf]
  %v238 = vld [vmem:[%s4 + $0x20] sm:$0xf]
  %v239 = vld [vmem:[%s4 + $0x24] sm:$0xf]
  %v240 = vld [vmem:[%s4 + $0x28] sm:$0xf]
  %v241 = vld [vmem:[%s4 + $0x2c] sm:$0xf]
  %v242 = vld [vmem:[%s4 + $0x30] sm:$0xf]
  %v243 = vld [vmem:[%s4 + $0x34] sm:$0xf]
  %v244 = vld [vmem:[%s4 + $0x38] sm:$0xf]
  %v245 = vld [vmem:[%s4 + $0x3c] sm:$0xf]
  %v246 = vld [vmem:[%s4 + $0x40] sm:$0xf]
  %v247 = vld [vmem:[%s4 + $0x44] sm:$0xf]
  %v248 = vld [vmem:[%s4 + $0x48] sm:$0xf]
  %v249 = vld [vmem:[%s4 + $0x4c] sm:$0xf]
  %v250 = vld [vmem:[%s4 + $0x50] sm:$0xf]
  %v251 = vld [vmem:[%s4 + $0x54] sm:$0xf]
  %v252 = vld [vmem:[%s4 + $0x58] sm:$0xf]
  %v253 = vld [vmem:[%s4 + $0x5c] sm:$0xf]
  %v254 = vld [vmem:[%s4 + $0x60] sm:$0xf]
  %v255 = vld [vmem:[%s4 + $0x64] sm:$0xf]
  %v256 = vld [vmem:[%s4 + $0x68] sm:$0xf]
  %v257 = vld [vmem:[%s4 + $0x6c] sm:$0xf]
  %v258 = vld [vmem:[%s4 + $0x70] sm:$0xf]
  %v259 = vld [vmem:[%s4 + $0x74] sm:$0xf]
  %v260 = vld [vmem:[%s4 + $0x78] sm:$0xf]
  %v261 = vld [vmem:[%s4 + $0x7c] sm:$0xf]
  %v262 = vpack.c.bf16 %v228, %v228
  %v263 = vpack.c.bf16 %v229, %v229
  %v264 = vlaneseq
  %v265 = vshrl.u32 %v264, 7
  %v266 = vsub.s32 2, %v265
  %v267 = vrot.slane %v30, %v266
  %v300 = vunpack.c.l.b16 %v230
  %v301 = vunpack.c.l.b16 %v231
  %v302 = vunpack.c.l.b16 %v232
  %v303 = vunpack.c.l.b16 %v233
  %v304 = vunpack.c.l.b16 %v234
  %v305 = vunpack.c.l.b16 %v235
  %v306 = vunpack.c.l.b16 %v236
  %v307 = vunpack.c.l.b16 %v237
  %v308 = vunpack.c.l.b16 %v238
  %v309 = vunpack.c.l.b16 %v239
  %v310 = vunpack.c.l.b16 %v240
  %v311 = vunpack.c.l.b16 %v241
  %v312 = vunpack.c.l.b16 %v242
  %v313 = vunpack.c.l.b16 %v243
  %v314 = vunpack.c.l.b16 %v244
  %v315 = vunpack.c.l.b16 %v245
  %v316 = vunpack.c.l.b16 %v246
  %v317 = vunpack.c.l.b16 %v247
  %v318 = vunpack.c.l.b16 %v248
  %v319 = vunpack.c.l.b16 %v249
  %v320 = vunpack.c.l.b16 %v250
  %v321 = vunpack.c.l.b16 %v251
  %v322 = vunpack.c.l.b16 %v252
  %v323 = vunpack.c.l.b16 %v253
  %v324 = vunpack.c.l.b16 %v254
  %v325 = vunpack.c.l.b16 %v255
  %v326 = vunpack.c.l.b16 %v256
  %v327 = vunpack.c.l.b16 %v257
  %v328 = vunpack.c.l.b16 %v258
  %v329 = vunpack.c.l.b16 %v259
  %v330 = vunpack.c.l.b16 %v260
  %v331 = vunpack.c.l.b16 %v261
  %v332 = vpack.c.b16 %v301, %v300
  %v333 = vpack.c.b16 %v303, %v302
  %v334 = vpack.c.b16 %v305, %v304
  %v335 = vpack.c.b16 %v307, %v306
  %v336 = vpack.c.b16 %v309, %v308
  %v337 = vpack.c.b16 %v311, %v310
  %v338 = vpack.c.b16 %v313, %v312
  %v339 = vpack.c.b16 %v315, %v314
  %v340 = vpack.c.b16 %v317, %v316
  %v341 = vpack.c.b16 %v319, %v318
  %v342 = vpack.c.b16 %v321, %v320
  %v343 = vpack.c.b16 %v323, %v322
  %v344 = vpack.c.b16 %v325, %v324
  %v345 = vpack.c.b16 %v327, %v326
  %v346 = vpack.c.b16 %v329, %v328
  %v347 = vpack.c.b16 %v331, %v330
  %364 = vmatprep.subr.bf16.mxu0 0
  %365 = vmatpush1.bf16.msra.mxu0 %v332
  %366 = vmatprep.subr.bf16.mxu0 0
  %367 = vmatpush1.bf16.msra.mxu0 %v333
  %368 = vmatprep.subr.bf16.mxu0 0
  %369 = vmatpush1.bf16.msra.mxu0 %v334
  %370 = vmatprep.subr.bf16.mxu0 0
  %371 = vmatpush1.bf16.msra.mxu0 %v335
  %372 = vmatprep.subr.bf16.mxu0 0
  %373 = vmatpush1.bf16.msra.mxu0 %v336
  %374 = vmatprep.subr.bf16.mxu0 0
  %375 = vmatpush1.bf16.msra.mxu0 %v337
  %376 = vmatprep.subr.bf16.mxu0 0
  %377 = vmatpush1.bf16.msra.mxu0 %v338
  %378 = vmatprep.subr.bf16.mxu0 0
  %379 = vmatpush1.bf16.msra.mxu0 %v339
  %380 = vmatprep.subr.bf16.mxu0 0
  %381 = vmatpush1.bf16.msra.mxu0 %v340
  %382 = vmatprep.subr.bf16.mxu0 0
  %383 = vmatpush1.bf16.msra.mxu0 %v341
  %384 = vmatprep.subr.bf16.mxu0 0
  %385 = vmatpush1.bf16.msra.mxu0 %v342
  %386 = vmatprep.subr.bf16.mxu0 0
  %387 = vmatpush1.bf16.msra.mxu0 %v343
  %388 = vmatprep.subr.bf16.mxu0 0
  %389 = vmatpush1.bf16.msra.mxu0 %v344
  %390 = vmatprep.subr.bf16.mxu0 0
  %391 = vmatpush1.bf16.msra.mxu0 %v345
  %392 = vmatprep.subr.bf16.mxu0 0
  %393 = vmatpush1.bf16.msra.mxu0 %v346
  %394 = vmatprep.subr.bf16.mxu0 0
  %395 = vmatpush1.bf16.msra.mxu0 %v347
  %396 = vmatprep.mubr.bf16.mxu0 %v263
  %397 = vmatmul.mubr.bf16.gmra.mrb[0].mxu0 %v262
  %v398 = vpop.f32.mrb[0].mxu0
  %v399 = vadd.f32 %v267, %v398
  %v400 = vpop.f32.mrb[0].mxu0
  %v401 = vpop.f32.mrb[0].mxu0
  %v402 = vpop.f32.mrb[0].mxu0
  %403 = vdwg.mxu0
  %v404 = vmax.f32 %v399, 0.0
  %v405 = vld [vmem:[%s5] sm:$0xf]
  %v406 = vld [vmem:[%s5 + $0x4] sm:$0xf]
  %v407 = vld [vmem:[%s5 + $0x8] sm:$0xf]
  %v408 = vld [vmem:[%s5 + $0xc] sm:$0xf]
  %v409 = vpack.c.bf16 %v89, %v89
  %v410 = vld [vmem:[%s5 + $0x10] sm:$0xf]
  %v411 = vld [vmem:[%s5 + $0x14] sm:$0xf]
  %v412 = vld [vmem:[%s5 + $0x18] sm:$0xf]
  %v413 = vld [vmem:[%s5 + $0x1c] sm:$0xf]
  %v414 = vpack.c.bf16 %v404, %v404
  %v419 = vunpack.c.l.b16 %v410
  %v420 = vunpack.c.l.b16 %v411
  %v421 = vunpack.c.l.b16 %v412
  %v422 = vunpack.c.l.b16 %v413
  %v423 = vpack.c.b16 %v420, %v419
  %v424 = vpack.c.b16 %v422, %v421
  %vm427 = vcmask 261120
  %v429 = vsel %vm427, %v414, 0
  %431 = vmatprep.subr.bf16.mxu0 0
  %432 = vmatpush1.bf16.msra.mxu0 %v423
  %433 = vmatprep.subr.bf16.mxu0 0
  %434 = vmatpush1.bf16.msra.mxu0 %v424
  %435 = vmatprep.subr.bf16.mxu0 0
  %436 = vmatpush1.bf16.msra.mxu0 0
  %437 = vmatprep.subr.bf16.mxu0 0
  %438 = vmatpush1.bf16.msra.mxu0 0
  %439 = vmatprep.subr.bf16.mxu0 0
  %440 = vmatpush1.bf16.msra.mxu0 0
  %441 = vmatprep.subr.bf16.mxu0 0
  %442 = vmatpush1.bf16.msra.mxu0 0
  %443 = vmatprep.subr.bf16.mxu0 0
  %444 = vmatpush1.bf16.msra.mxu0 0
  %445 = vmatprep.subr.bf16.mxu0 0
  %446 = vmatpush1.bf16.msra.mxu0 0
  %447 = vmatprep.subr.bf16.mxu0 0
  %448 = vmatpush1.bf16.msra.mxu0 0
  %449 = vmatprep.subr.bf16.mxu0 0
  %450 = vmatpush1.bf16.msra.mxu0 0
  %451 = vmatprep.subr.bf16.mxu0 0
  %452 = vmatpush1.bf16.msra.mxu0 0
  %453 = vmatprep.subr.bf16.mxu0 0
  %454 = vmatpush1.bf16.msra.mxu0 0
  %455 = vmatprep.subr.bf16.mxu0 0
  %456 = vmatpush1.bf16.msra.mxu0 0
  %457 = vmatprep.subr.bf16.mxu0 0
  %458 = vmatpush1.bf16.msra.mxu0 0
  %459 = vmatprep.subr.bf16.mxu0 0
  %460 = vmatpush1.bf16.msra.mxu0 0
  %461 = vmatprep.subr.bf16.mxu0 0
  %462 = vmatpush1.bf16.msra.mxu0 0
  %463 = vmatprep.mubr.bf16.mxu0 0
  %464 = vmatmul.mubr.bf16.gmra.mrb[0].mxu0 %v429
  %v465 = vpop.f32.mrb[0].mxu0
  %v466 = vadd.f32 0.0, %v465
  %v467 = vpop.f32.mrb[0].mxu0
  %v468 = vpop.f32.mrb[0].mxu0
  %v469 = vpop.f32.mrb[0].mxu0
  %470 = vdwg.mxu0
  %v475 = vunpack.c.l.b16 %v405
  %v476 = vunpack.c.l.b16 %v406
  %v477 = vunpack.c.l.b16 %v407
  %v478 = vunpack.c.l.b16 %v408
  %v479 = vpack.c.b16 %v476, %v475
  %v480 = vpack.c.b16 %v478, %v477
  %v484 = vsel %vm427, %v409, 0
  %486 = vmatprep.subr.bf16.mxu0 0
  %487 = vmatpush1.bf16.msra.mxu0 %v479
  %488 = vmatprep.subr.bf16.mxu0 0
  %489 = vmatpush1.bf16.msra.mxu0 %v480
  %490 = vmatprep.subr.bf16.mxu0 0
  %491 = vmatpush1.bf16.msra.mxu0 0
  %492 = vmatprep.subr.bf16.mxu0 0
  %493 = vmatpush1.bf16.msra.mxu0 0
  %494 = vmatprep.subr.bf16.mxu0 0
  %495 = vmatpush1.bf16.msra.mxu0 0
  %496 = vmatprep.subr.bf16.mxu0 0
  %497 = vmatpush1.bf16.msra.mxu0 0
  %498 = vmatprep.subr.bf16.mxu0 0
  %499 = vmatpush1.bf16.msra.mxu0 0
  %500 = vmatprep.subr.bf16.mxu0 0
  %501 = vmatpush1.bf16.msra.mxu0 0
  %502 = vmatprep.subr.bf16.mxu0 0
  %503 = vmatpush1.bf16.msra.mxu0 0
  %504 = vmatprep.subr.bf16.mxu0 0
  %505 = vmatpush1.bf16.msra.mxu0 0
  %506 = vmatprep.subr.bf16.mxu0 0
  %507 = vmatpush1.bf16.msra.mxu0 0
  %508 = vmatprep.subr.bf16.mxu0 0
  %509 = vmatpush1.bf16.msra.mxu0 0
  %510 = vmatprep.subr.bf16.mxu0 0
  %511 = vmatpush1.bf16.msra.mxu0 0
  %512 = vmatprep.subr.bf16.mxu0 0
  %513 = vmatpush1.bf16.msra.mxu0 0
  %514 = vmatprep.subr.bf16.mxu0 0
  %515 = vmatpush1.bf16.msra.mxu0 0
  %516 = vmatprep.subr.bf16.mxu0 0
  %517 = vmatpush1.bf16.msra.mxu0 0
  %518 = vmatprep.mubr.bf16.mxu0 0
  %519 = vmatmul.mubr.bf16.gmra.mrb[0].mxu0 %v484
  %v520 = vpop.f32.mrb[0].mxu0
  %v521 = vadd.f32 %v466, %v520
  %v522 = vpop.f32.mrb[0].mxu0
  %v523 = vpop.f32.mrb[0].mxu0
  %v524 = vpop.f32.mrb[0].mxu0
  %525 = vdwg.mxu0
  %v526 = vlaneseq
  %v527 = vshrl.u32 %v526, 7
  %v528 = vsub.s32 3, %v527
  %v529 = vrot.slane %v30, %v528
  %v530 = vadd.f32 %v521, %v529
  %v531 = vmax.f32 %v530, 0.0
  %v532 = vld [vmem:[%s6] sm:$0xf]
  %v533 = vld [vmem:[%s6 + $0x4] sm:$0xf]
  %v534 = vld [vmem:[%s6 + $0x8] sm:$0xf]
  %v535 = vld [vmem:[%s6 + $0xc] sm:$0xf]
  %v536 = vld [vmem:[%s6 + $0x10] sm:$0xf]
  %v537 = vld [vmem:[%s6 + $0x14] sm:$0xf]
  %v538 = vld [vmem:[%s6 + $0x18] sm:$0xf]
  %v539 = vld [vmem:[%s6 + $0x1c] sm:$0xf]
  %v540 = vpack.c.bf16 %v531, %v531
  %v541 = vlaneseq
  %v542 = vshrl.u32 %v541, 7
  %v543 = vsub.s32 4, %v542
  %v544 = vrot.slane %v30, %v543
  %v553 = vunpack.c.l.b16 %v532
  %v554 = vunpack.c.l.b16 %v533
  %v555 = vunpack.c.l.b16 %v534
  %v556 = vunpack.c.l.b16 %v535
  %v557 = vunpack.c.l.b16 %v536
  %v558 = vunpack.c.l.b16 %v537
  %v559 = vunpack.c.l.b16 %v538
  %v560 = vunpack.c.l.b16 %v539
  %v561 = vpack.c.b16 %v554, %v553
  %v562 = vpack.c.b16 %v556, %v555
  %v563 = vpack.c.b16 %v558, %v557
  %v564 = vpack.c.b16 %v560, %v559
  %vm569 = vcmask 523264
  %v571 = vsel %vm569, %v540, 0
  %573 = vmatprep.subr.bf16.mxu0 0
  %574 = vmatpush1.bf16.msra.mxu0 %v561
  %575 = vmatprep.subr.bf16.mxu0 0
  %576 = vmatpush1.bf16.msra.mxu0 %v562
  %577 = vmatprep.subr.bf16.mxu0 0
  %578 = vmatpush1.bf16.msra.mxu0 %v563
  %579 = vmatprep.subr.bf16.mxu0 0
  %580 = vmatpush1.bf16.msra.mxu0 %v564
  %581 = vmatprep.subr.bf16.mxu0 0
  %582 = vmatpush1.bf16.msra.mxu0 0
  %583 = vmatprep.subr.bf16.mxu0 0
  %584 = vmatpush1.bf16.msra.mxu0 0
  %585 = vmatprep.subr.bf16.mxu0 0
  %586 = vmatpush1.bf16.msra.mxu0 0
  %587 = vmatprep.subr.bf16.mxu0 0
  %588 = vmatpush1.bf16.msra.mxu0 0
  %589 = vmatprep.subr.bf16.mxu0 0
  %590 = vmatpush1.bf16.msra.mxu0 0
  %591 = vmatprep.subr.bf16.mxu0 0
  %592 = vmatpush1.bf16.msra.mxu0 0
  %593 = vmatprep.subr.bf16.mxu0 0
  %594 = vmatpush1.bf16.msra.mxu0 0
  %595 = vmatprep.subr.bf16.mxu0 0
  %596 = vmatpush1.bf16.msra.mxu0 0
  %597 = vmatprep.subr.bf16.mxu0 0
  %598 = vmatpush1.bf16.msra.mxu0 0
  %599 = vmatprep.subr.bf16.mxu0 0
  %600 = vmatpush1.bf16.msra.mxu0 0
  %601 = vmatprep.subr.bf16.mxu0 0
  %602 = vmatpush1.bf16.msra.mxu0 0
  %603 = vmatprep.subr.bf16.mxu0 0
  %604 = vmatpush1.bf16.msra.mxu0 0
  %605 = vmatprep.mubr.bf16.mxu0 0
  %606 = vmatmul.mubr.bf16.gmra.mrb[0].mxu0 %v571
  %v607 = vpop.f32.mrb[0].mxu0
  %v608 = vadd.f32 %v544, %v607
  %v609 = vpop.f32.mrb[0].mxu0
  %v610 = vpop.f32.mrb[0].mxu0
  %v611 = vpop.f32.mrb[0].mxu0
  %612 = vdwg.mxu0
  %613 = vst [vmem:[%s8] sm:$0xff] %v608
  // Predicated region
  $region34: #{mixed_dqn_unc_cnn_forward.1} parent=0 // pred_check
    _
  $region35: #{mixed_dqn_unc_cnn_forward.1} parent=0 // pred_check_branch
    %615 = sbr.rel (0) target = $region37
  $region36: #{mixed_dqn_unc_cnn_forward.1} parent=0 // pred_region
    _
  $region37: #{mixed_dqn_unc_cnn_forward.1} parent=0 // pred_fallthru
    _
  // Predicated region
  $region38: #{mixed_dqn_unc_cnn_forward.1} parent=0 // pred_check
    _
  $region39: #{mixed_dqn_unc_cnn_forward.1} parent=0 // pred_check_branch
    %617 = sbr.rel (0) target = $region41
  $region40: #{mixed_dqn_unc_cnn_forward.1} parent=0 // pred_region
    _
  $region41: #{mixed_dqn_unc_cnn_forward.1} parent=0 // pred_fallthru
    _

</llo_original>
